<compile_context>
chip_gen: v6e
topology: v6e:2x2x1
jax: 0.10.0
libtpu: 0.0.40
codegen_flags: <defaults>
</compile_context>

<pallas_src>
import functools
import math

import jax
import jax.numpy as jnp
from jax.experimental import pallas as pl
from jax.experimental.pallas import tpu as pltpu


# ---------------------------------------------------------------------------
# Kernel bodies
# ---------------------------------------------------------------------------
def _fused_kernel(n_linear, nums, x_is_3d, x_ref, *refs):
    """Single-invocation kernel: whole ensemble stack resident in VMEM.

    refs = [W0, b0, W1, b1, ..., o_ref]; ensemble loop unrolled in-body.
    """
    w_refs = refs[0:2 * n_linear:2]
    b_refs = refs[1:2 * n_linear:2]
    o_ref = refs[2 * n_linear]

    x_shared = None if x_is_3d else x_ref[...]          # 2-D input: load once
    for e in range(nums):
        h = x_ref[e] if x_is_3d else x_shared           # (B, in_features)
        for li in range(n_linear):
            w = w_refs[li][e]                           # (in_l, out_l)
            h = jnp.dot(h.astype(w.dtype), w,
                        preferred_element_type=jnp.float32)
            h = h + b_refs[li][e].astype(jnp.float32)   # (1, out_l) broadcasts
            if li < n_linear - 1:
                h = jnp.maximum(h, 0.0)                 # nn.ReLU between hidden layers
        o_ref[e] = h.astype(o_ref.dtype)                # lane-dense full-width store


def _tiled_kernel(n_linear, x_is_3d, x_ref, *refs):
    """Tiled kernel: one (ensemble member, batch tile) per grid step."""
    w_refs = refs[0:2 * n_linear:2]
    b_refs = refs[1:2 * n_linear:2]
    o_ref = refs[2 * n_linear]

    h = x_ref[0] if x_is_3d else x_ref[...]             # (tile_m, in_features)
    for li in range(n_linear):
        w = w_refs[li][0]
        h = jnp.dot(h.astype(w.dtype), w, preferred_element_type=jnp.float32)
        h = h + b_refs[li][0].astype(jnp.float32)
        if li < n_linear - 1:
            h = jnp.maximum(h, 0.0)
    o_ref[0] = h.astype(o_ref.dtype)


# ---------------------------------------------------------------------------
# Wrapper
# ---------------------------------------------------------------------------
def _pick_tile_m(B, cap, align):
    """Largest batch tile that avoids pad/slice: B itself, or an aligned divisor."""
    if B <= cap:
        return B, False
    t = (cap // align) * align
    while t >= align:
        if B % t == 0:
            return t, False
        t -= align
    return (cap // align) * align, True                 # ragged: fall back to padding


def vectorized_mlp_forward(x, params, *, tile_m_cap=512, fused=None):
    """Ensemble MLP forward.

    x:      (nums, B, in_features) or (B, in_features).
    params: list of (W, b); W (nums, in_l, out_l), b (nums, 1, out_l).
            Store weights in bf16 (params_to_bf16, once, outside the forward)
            for MXU throughput; accumulation is always f32.
    Returns (nums, B, out_features) float32.

    tile_m_cap: batch-tile cap for the tiled path (512 suits v6e/v7x; use
    128-256 on v5e).
    """
    E = params[0][0].shape[0]
    x_is_3d = x.ndim == 3
    if x_is_3d:
        assert x.shape[0] == E
        B, in_features = x.shape[1], x.shape[2]
    else:
        assert x.ndim == 2
        B, in_features = x.shape
    out_features = params[-1][0].shape[-1]
    n_linear = len(params)

    flat_params = []
    param_bytes = 0
    flops = 0
    for (W, b) in params:
        flat_params.extend([W, b])
        param_bytes += W.size * W.dtype.itemsize + b.size * b.dtype.itemsize
        flops += 2 * E * B * W.shape[1] * W.shape[2]
    out_bytes = E * B * out_features * 4
    bytes_accessed = x.size * x.dtype.itemsize + param_bytes + out_bytes
    cost = pl.CostEstimate(flops=flops, transcendentals=0,
                           bytes_accessed=bytes_accessed)
    max_w = max(max(W.shape[1], W.shape[2]) for W, _ in params)

    # ---- path selection ---------------------------------------------------
    fused_vmem = (x.size * x.dtype.itemsize + param_bytes + out_bytes
                  + 2 * B * max_w * 4)
    if fused is None:
        fused = (E <= 32) and (fused_vmem <= (8 << 20))

    if fused:
        # Single grid step: no per-step pipeline overhead, everything resident.
        return pl.pallas_call(
            functools.partial(_fused_kernel, n_linear, E, x_is_3d),
            out_shape=jax.ShapeDtypeStruct((E, B, out_features), jnp.float32),
            cost_estimate=cost,
        )(x, *flat_params)

    # ---- tiled path ---------------------------------------------------------
    compute_dtype = params[0][0].dtype
    align = 16 if compute_dtype == jnp.bfloat16 else 8
    tile_m, needs_pad = _pick_tile_m(B, tile_m_cap, align)
    if needs_pad:
        n_bt = pl.cdiv(B, tile_m)
        B_run = n_bt * tile_m
        pad = [(0, 0)] * x.ndim
        pad[-2] = (0, B_run - B)
        x = jnp.pad(x, pad)
    else:
        n_bt = B // tile_m
        B_run = B

    if x_is_3d:
        x_spec = pl.BlockSpec((1, tile_m, in_features), lambda e, i: (e, i, 0))
    else:
        # 2-D input: index_map ignores the ensemble axis (no HBM broadcast).
        x_spec = pl.BlockSpec((tile_m, in_features), lambda e, i: (i, 0))
    in_specs = [x_spec]
    for (W, b) in params:
        # Weight/bias blocks depend only on the ensemble index -> stay resident
        # in VMEM while the batch axis advances (no re-fetch per batch tile).
        in_specs.append(pl.BlockSpec((1,) + W.shape[1:], lambda e, i: (e, 0, 0)))
        in_specs.append(pl.BlockSpec((1,) + b.shape[1:], lambda e, i: (e, 0, 0)))

    # Explicit VMEM budget: 2x (x tile + out tile + one member's weight stack)
    # + activation working set + headroom.  (Weight specs could additionally
    # be single-buffered with pipeline_mode=pl.Buffered(1) if this gets tight.)
    per_member_params = param_bytes // E
    need = (2 * (tile_m * in_features * x.dtype.itemsize
                 + tile_m * out_features * 4
                 + per_member_params)
            + 2 * tile_m * max_w * 4 + (4 << 20))
    vmem_limit = int(min(max(need, 32 << 20), 128 << 20))

    out = pl.pallas_call(
        functools.partial(_tiled_kernel, n_linear, x_is_3d),
        grid=(E, n_bt),
        in_specs=in_specs,
        out_specs=pl.BlockSpec((1, tile_m, out_features), lambda e, i: (e, i, 0)),
        out_shape=jax.ShapeDtypeStruct((E, B_run, out_features), jnp.float32),
        compiler_params=pltpu.CompilerParams(
            # Megacore split lands on the ensemble axis -> each core keeps its
            # own weight subset resident (no duplicated weight DMA).
            dimension_semantics=("parallel", "arbitrary"),
            vmem_limit_bytes=vmem_limit),
        cost_estimate=cost,
    )(x, *flat_params)

    if B_run != B:
        out = out[:, :B, :]
    return out


def params_to_bf16(params):
    """One-time (outside-forward) conversion: weights bf16, biases stay f32."""
    return [(W.astype(jnp.bfloat16), b) for (W, b) in params]


# ---------------------------------------------------------------------------
# Param init & reference
# ---------------------------------------------------------------------------
def init_vectorized_mlp_params(key, in_features, out_features, hidden_features,
                               hidden_layers, nums):
    """Deterministic uniform init; layout matches VectorizedLinear parameters."""
    if hidden_layers == 0:
        dims = [in_features, out_features]
    else:
        dims = [in_features] + [hidden_features] * hidden_layers + [out_features]
    params = []
    for li in range(len(dims) - 1):
        fi, fo = dims[li], dims[li + 1]
        key, kw, kb = jax.random.split(key, 3)
        bound = 1.0 / math.sqrt(fi)
        W = jax.random.uniform(kw, (nums, fi, fo), jnp.float32, -bound, bound)
        b = jax.random.uniform(kb, (nums, 1, fo), jnp.float32, -bound, bound)
        params.append((W, b))
    return params


def reference_forward(x, params, nums):
    """Plain-JAX reference matching VectorizedMLP.forward."""
    if x.ndim == 2:
        x = jnp.broadcast_to(x[None], (nums,) + x.shape)
    h = x
    n = len(params)
    for li, (W, b) in enumerate(params):
        h = jnp.einsum('ebi,eio->ebo', h, W) + b
        if li < n - 1:
            h = jnp.maximum(h, 0.0)
    return h


# ---------------------------------------------------------------------------
# Self-test
# ---------------------------------------------------------------------------
if __name__ == "__main__":
    key = jax.random.PRNGKey(0)

    # Module-consistent small shapes -> fused single-step path.
    nums, B, in_f, hid_f, layers, out_f = 4, 8, 32, 32, 2, 8
    key, kx = jax.random.split(key)
    x3d = jax.random.normal(kx, (nums, B, in_f), jnp.float32)
    params = init_vectorized_mlp_params(key, in_f, out_f, hid_f, layers, nums)

    y = jax.block_until_ready(vectorized_mlp_forward(x3d, params))
    y_ref = reference_forward(x3d, params, nums)
    assert y.shape == (nums, B, out_f)
    assert jnp.allclose(y, y_ref, atol=1e-4, rtol=1e-4)

    # 2-D input path (used by every ensemble member; no materialized broadcast).
    x2d = x3d[0]
    y2 = jax.block_until_ready(vectorized_mlp_forward(x2d, params))
    y2_ref = reference_forward(x2d, params, nums)
    assert y2.shape == (nums, B, out_f)
    assert jnp.allclose(y2, y2_ref, atol=1e-4, rtol=1e-4)

    # bf16 weights (converted once, outside the forward), f32 accumulation.
    params_bf16 = params_to_bf16(params)
    yb = jax.block_until_ready(vectorized_mlp_forward(x3d, params_bf16))
    assert jnp.allclose(yb, y_ref, atol=1e-1, rtol=1e-1)

    # hidden_layers == 0 path (single VectorizedLinear + identity).
    key, k0 = jax.random.split(key)
    params0 = init_vectorized_mlp_params(k0, in_f, out_f, hid_f, 0, nums)
    y0 = jax.block_until_ready(vectorized_mlp_forward(x3d, params0))
    y0_ref = reference_forward(x3d, params0, nums)
    assert jnp.allclose(y0, y0_ref, atol=1e-4, rtol=1e-4)

    # Tiled path (grid=(E, n_bt)) with batch-tile divisor selection (no pad).
    nums2, B2, in2, hid2, out2 = 2, 256, 64, 128, 128
    key, kx2, kp2 = jax.random.split(key, 3)
    x_big = jax.random.normal(kx2, (nums2, B2, in2), jnp.float32)
    params_big = init_vectorized_mlp_params(kp2, in2, out2, hid2, 1, nums2)
    y_big = jax.block_until_ready(
        vectorized_mlp_forward(x_big, params_big, tile_m_cap=128, fused=False))
    y_big_ref = reference_forward(x_big, params_big, nums2)
    assert y_big.shape == (nums2, B2, out2)
    assert jnp.allclose(y_big, y_big_ref, atol=2e-2, rtol=2e-2)  # MXU-precision tol

    print("KERNEL_OK")
</pallas_src>

<mosaic_0001>
module attributes {stable_mosaic.version = 11 : i64} {
  func.func @_fused_kernel(%arg0: memref<4x8x32xf32, #tpu.memory_space<vmem>>, %arg1: memref<4x32x32xf32, #tpu.memory_space<vmem>>, %arg2: memref<4x1x32xf32, #tpu.memory_space<vmem>>, %arg3: memref<4x32x32xf32, #tpu.memory_space<vmem>>, %arg4: memref<4x1x32xf32, #tpu.memory_space<vmem>>, %arg5: memref<4x32x8xf32, #tpu.memory_space<vmem>>, %arg6: memref<4x1x8xf32, #tpu.memory_space<vmem>>, %arg7: memref<4x8x8xf32, #tpu.memory_space<vmem>>) attributes {dimension_semantics = [], scalar_prefetch = 0 : i64, scratch_operands = 0 : i64, tpu.core_type = #tpu.core_type<tc>} {
    %c0 = arith.constant 0 : index
    %c0_0 = arith.constant 0 : index
    %c0_1 = arith.constant 0 : index
    %0 = vector.load %arg0[%c0, %c0_0, %c0_1] : memref<4x8x32xf32, #tpu.memory_space<vmem>>, vector<1x8x32xf32>
    %1 = vector.shape_cast %0 : vector<1x8x32xf32> to vector<8x32xf32>
    %c0_2 = arith.constant 0 : index
    %c0_3 = arith.constant 0 : index
    %c0_4 = arith.constant 0 : index
    %2 = vector.load %arg1[%c0_2, %c0_3, %c0_4] : memref<4x32x32xf32, #tpu.memory_space<vmem>>, vector<1x32x32xf32>
    %3 = vector.shape_cast %2 : vector<1x32x32xf32> to vector<32x32xf32>
    %cst = arith.constant dense<0.000000e+00> : vector<8x32xf32>
    %4 = tpu.matmul %1, %3, %cst {dimension_numbers = #tpu.dot_dimension_numbers<[1], [0], [0], [1], [0, 0, 1, 1], [], []>} : vector<8x32xf32>, vector<32x32xf32>, vector<8x32xf32> -> vector<8x32xf32>
    %c0_5 = arith.constant 0 : index
    %c0_6 = arith.constant 0 : index
    %c0_7 = arith.constant 0 : index
    %5 = vector.load %arg2[%c0_5, %c0_6, %c0_7] : memref<4x1x32xf32, #tpu.memory_space<vmem>>, vector<1x1x32xf32>
    %6 = vector.shape_cast %5 : vector<1x1x32xf32> to vector<1x32xf32>
    %7 = vector.broadcast %6 : vector<1x32xf32> to vector<8x32xf32>
    %8 = arith.addf %4, %7 : vector<8x32xf32>
    %cst_8 = arith.constant 0.000000e+00 : f32
    %9 = vector.broadcast %cst_8 : f32 to vector<8x32xf32>
    %10 = arith.maximumf %8, %9 : vector<8x32xf32>
    %c0_9 = arith.constant 0 : index
    %c0_10 = arith.constant 0 : index
    %c0_11 = arith.constant 0 : index
    %11 = vector.load %arg3[%c0_9, %c0_10, %c0_11] : memref<4x32x32xf32, #tpu.memory_space<vmem>>, vector<1x32x32xf32>
    %12 = vector.shape_cast %11 : vector<1x32x32xf32> to vector<32x32xf32>
    %cst_12 = arith.constant dense<0.000000e+00> : vector<8x32xf32>
    %13 = tpu.matmul %10, %12, %cst_12 {dimension_numbers = #tpu.dot_dimension_numbers<[1], [0], [0], [1], [0, 0, 1, 1], [], []>} : vector<8x32xf32>, vector<32x32xf32>, vector<8x32xf32> -> vector<8x32xf32>
    %c0_13 = arith.constant 0 : index
    %c0_14 = arith.constant 0 : index
    %c0_15 = arith.constant 0 : index
    %14 = vector.load %arg4[%c0_13, %c0_14, %c0_15] : memref<4x1x32xf32, #tpu.memory_space<vmem>>, vector<1x1x32xf32>
    %15 = vector.shape_cast %14 : vector<1x1x32xf32> to vector<1x32xf32>
    %16 = vector.broadcast %15 : vector<1x32xf32> to vector<8x32xf32>
    %17 = arith.addf %13, %16 : vector<8x32xf32>
    %cst_16 = arith.constant 0.000000e+00 : f32
    %18 = vector.broadcast %cst_16 : f32 to vector<8x32xf32>
    %19 = arith.maximumf %17, %18 : vector<8x32xf32>
    %c0_17 = arith.constant 0 : index
    %c0_18 = arith.constant 0 : index
    %c0_19 = arith.constant 0 : index
    %20 = vector.load %arg5[%c0_17, %c0_18, %c0_19] : memref<4x32x8xf32, #tpu.memory_space<vmem>>, vector<1x32x8xf32>
    %21 = vector.shape_cast %20 : vector<1x32x8xf32> to vector<32x8xf32>
    %cst_20 = arith.constant dense<0.000000e+00> : vector<8x8xf32>
    %22 = tpu.matmul %19, %21, %cst_20 {dimension_numbers = #tpu.dot_dimension_numbers<[1], [0], [0], [1], [0, 0, 1, 1], [], []>} : vector<8x32xf32>, vector<32x8xf32>, vector<8x8xf32> -> vector<8x8xf32>
    %c0_21 = arith.constant 0 : index
    %c0_22 = arith.constant 0 : index
    %c0_23 = arith.constant 0 : index
    %23 = vector.load %arg6[%c0_21, %c0_22, %c0_23] : memref<4x1x8xf32, #tpu.memory_space<vmem>>, vector<1x1x8xf32>
    %24 = vector.shape_cast %23 : vector<1x1x8xf32> to vector<1x8xf32>
    %25 = vector.broadcast %24 : vector<1x8xf32> to vector<8x8xf32>
    %26 = arith.addf %22, %25 : vector<8x8xf32>
    %c0_24 = arith.constant 0 : index
    %c0_25 = arith.constant 0 : index
    %c0_26 = arith.constant 0 : index
    %27 = vector.load %arg7[%c0_24, %c0_25, %c0_26] : memref<4x8x8xf32, #tpu.memory_space<vmem>>, vector<1x8x8xf32>
    %28 = vector.shape_cast %27 : vector<1x8x8xf32> to vector<8x8xf32>
    %29 = vector.shape_cast %26 : vector<8x8xf32> to vector<1x8x8xf32>
    tpu.vector_store %arg7[%c0_24, %c0_25, %c0_26], %29 {strides = array<i32>} : memref<4x8x8xf32, #tpu.memory_space<vmem>>, vector<1x8x8xf32>,
    %c1 = arith.constant 1 : index
    %c0_27 = arith.constant 0 : index
    %c0_28 = arith.constant 0 : index
    %30 = vector.load %arg0[%c1, %c0_27, %c0_28] : memref<4x8x32xf32, #tpu.memory_space<vmem>>, vector<1x8x32xf32>
    %31 = vector.shape_cast %30 : vector<1x8x32xf32> to vector<8x32xf32>
    %c1_29 = arith.constant 1 : index
    %c0_30 = arith.constant 0 : index
    %c0_31 = arith.constant 0 : index
    %32 = vector.load %arg1[%c1_29, %c0_30, %c0_31] : memref<4x32x32xf32, #tpu.memory_space<vmem>>, vector<1x32x32xf32>
    %33 = vector.shape_cast %32 : vector<1x32x32xf32> to vector<32x32xf32>
    %cst_32 = arith.constant dense<0.000000e+00> : vector<8x32xf32>
    %34 = tpu.matmul %31, %33, %cst_32 {dimension_numbers = #tpu.dot_dimension_numbers<[1], [0], [0], [1], [0, 0, 1, 1], [], []>} : vector<8x32xf32>, vector<32x32xf32>, vector<8x32xf32> -> vector<8x32xf32>
    %c1_33 = arith.constant 1 : index
    %c0_34 = arith.constant 0 : index
    %c0_35 = arith.constant 0 : index
    %35 = vector.load %arg2[%c1_33, %c0_34, %c0_35] : memref<4x1x32xf32, #tpu.memory_space<vmem>>, vector<1x1x32xf32>
    %36 = vector.shape_cast %35 : vector<1x1x32xf32> to vector<1x32xf32>
    %37 = vector.broadcast %36 : vector<1x32xf32> to vector<8x32xf32>
    %38 = arith.addf %34, %37 : vector<8x32xf32>
    %cst_36 = arith.constant 0.000000e+00 : f32
    %39 = vector.broadcast %cst_36 : f32 to vector<8x32xf32>
    %40 = arith.maximumf %38, %39 : vector<8x32xf32>
    %c1_37 = arith.constant 1 : index
    %c0_38 = arith.constant 0 : index
    %c0_39 = arith.constant 0 : index
    %41 = vector.load %arg3[%c1_37, %c0_38, %c0_39] : memref<4x32x32xf32, #tpu.memory_space<vmem>>, vector<1x32x32xf32>
    %42 = vector.shape_cast %41 : vector<1x32x32xf32> to vector<32x32xf32>
    %cst_40 = arith.constant dense<0.000000e+00> : vector<8x32xf32>
    %43 = tpu.matmul %40, %42, %cst_40 {dimension_numbers = #tpu.dot_dimension_numbers<[1], [0], [0], [1], [0, 0, 1, 1], [], []>} : vector<8x32xf32>, vector<32x32xf32>, vector<8x32xf32> -> vector<8x32xf32>
    %c1_41 = arith.constant 1 : index
    %c0_42 = arith.constant 0 : index
    %c0_43 = arith.constant 0 : index
    %44 = vector.load %arg4[%c1_41, %c0_42, %c0_43] : memref<4x1x32xf32, #tpu.memory_space<vmem>>, vector<1x1x32xf32>
    %45 = vector.shape_cast %44 : vector<1x1x32xf32> to vector<1x32xf32>
    %46 = vector.broadcast %45 : vector<1x32xf32> to vector<8x32xf32>
    %47 = arith.addf %43, %46 : vector<8x32xf32>
    %cst_44 = arith.constant 0.000000e+00 : f32
    %48 = vector.broadcast %cst_44 : f32 to vector<8x32xf32>
    %49 = arith.maximumf %47, %48 : vector<8x32xf32>
    %c1_45 = arith.constant 1 : index
    %c0_46 = arith.constant 0 : index
    %c0_47 = arith.constant 0 : index
    %50 = vector.load %arg5[%c1_45, %c0_46, %c0_47] : memref<4x32x8xf32, #tpu.memory_space<vmem>>, vector<1x32x8xf32>
    %51 = vector.shape_cast %50 : vector<1x32x8xf32> to vector<32x8xf32>
    %cst_48 = arith.constant dense<0.000000e+00> : vector<8x8xf32>
    %52 = tpu.matmul %49, %51, %cst_48 {dimension_numbers = #tpu.dot_dimension_numbers<[1], [0], [0], [1], [0, 0, 1, 1], [], []>} : vector<8x32xf32>, vector<32x8xf32>, vector<8x8xf32> -> vector<8x8xf32>
    %c1_49 = arith.constant 1 : index
    %c0_50 = arith.constant 0 : index
    %c0_51 = arith.constant 0 : index
    %53 = vector.load %arg6[%c1_49, %c0_50, %c0_51] : memref<4x1x8xf32, #tpu.memory_space<vmem>>, vector<1x1x8xf32>
    %54 = vector.shape_cast %53 : vector<1x1x8xf32> to vector<1x8xf32>
    %55 = vector.broadcast %54 : vector<1x8xf32> to vector<8x8xf32>
    %56 = arith.addf %52, %55 : vector<8x8xf32>
    %c1_52 = arith.constant 1 : index
    %c0_53 = arith.constant 0 : index
    %c0_54 = arith.constant 0 : index
    %57 = vector.load %arg7[%c1_52, %c0_53, %c0_54] : memref<4x8x8xf32, #tpu.memory_space<vmem>>, vector<1x8x8xf32>
    %58 = vector.shape_cast %57 : vector<1x8x8xf32> to vector<8x8xf32>
    %59 = vector.shape_cast %56 : vector<8x8xf32> to vector<1x8x8xf32>
    tpu.vector_store %arg7[%c1_52, %c0_53, %c0_54], %59 {strides = array<i32>} : memref<4x8x8xf32, #tpu.memory_space<vmem>>, vector<1x8x8xf32>,
    %c2 = arith.constant 2 : index
    %c0_55 = arith.constant 0 : index
    %c0_56 = arith.constant 0 : index
    %60 = vector.load %arg0[%c2, %c0_55, %c0_56] : memref<4x8x32xf32, #tpu.memory_space<vmem>>, vector<1x8x32xf32>
    %61 = vector.shape_cast %60 : vector<1x8x32xf32> to vector<8x32xf32>
    %c2_57 = arith.constant 2 : index
    %c0_58 = arith.constant 0 : index
    %c0_59 = arith.constant 0 : index
    %62 = vector.load %arg1[%c2_57, %c0_58, %c0_59] : memref<4x32x32xf32, #tpu.memory_space<vmem>>, vector<1x32x32xf32>
    %63 = vector.shape_cast %62 : vector<1x32x32xf32> to vector<32x32xf32>
    %cst_60 = arith.constant dense<0.000000e+00> : vector<8x32xf32>
    %64 = tpu.matmul %61, %63, %cst_60 {dimension_numbers = #tpu.dot_dimension_numbers<[1], [0], [0], [1], [0, 0, 1, 1], [], []>} : vector<8x32xf32>, vector<32x32xf32>, vector<8x32xf32> -> vector<8x32xf32>
    %c2_61 = arith.constant 2 : index
    %c0_62 = arith.constant 0 : index
    %c0_63 = arith.constant 0 : index
    %65 = vector.load %arg2[%c2_61, %c0_62, %c0_63] : memref<4x1x32xf32, #tpu.memory_space<vmem>>, vector<1x1x32xf32>
    %66 = vector.shape_cast %65 : vector<1x1x32xf32> to vector<1x32xf32>
    %67 = vector.broadcast %66 : vector<1x32xf32> to vector<8x32xf32>
    %68 = arith.addf %64, %67 : vector<8x32xf32>
    %cst_64 = arith.constant 0.000000e+00 : f32
    %69 = vector.broadcast %cst_64 : f32 to vector<8x32xf32>
    %70 = arith.maximumf %68, %69 : vector<8x32xf32>
    %c2_65 = arith.constant 2 : index
    %c0_66 = arith.constant 0 : index
    %c0_67 = arith.constant 0 : index
    %71 = vector.load %arg3[%c2_65, %c0_66, %c0_67] : memref<4x32x32xf32, #tpu.memory_space<vmem>>, vector<1x32x32xf32>
    %72 = vector.shape_cast %71 : vector<1x32x32xf32> to vector<32x32xf32>
    %cst_68 = arith.constant dense<0.000000e+00> : vector<8x32xf32>
    %73 = tpu.matmul %70, %72, %cst_68 {dimension_numbers = #tpu.dot_dimension_numbers<[1], [0], [0], [1], [0, 0, 1, 1], [], []>} : vector<8x32xf32>, vector<32x32xf32>, vector<8x32xf32> -> vector<8x32xf32>
    %c2_69 = arith.constant 2 : index
    %c0_70 = arith.constant 0 : index
    %c0_71 = arith.constant 0 : index
    %74 = vector.load %arg4[%c2_69, %c0_70, %c0_71] : memref<4x1x32xf32, #tpu.memory_space<vmem>>, vector<1x1x32xf32>
    %75 = vector.shape_cast %74 : vector<1x1x32xf32> to vector<1x32xf32>
    %76 = vector.broadcast %75 : vector<1x32xf32> to vector<8x32xf32>
    %77 = arith.addf %73, %76 : vector<8x32xf32>
    %cst_72 = arith.constant 0.000000e+00 : f32
    %78 = vector.broadcast %cst_72 : f32 to vector<8x32xf32>
    %79 = arith.maximumf %77, %78 : vector<8x32xf32>
    %c2_73 = arith.constant 2 : index
    %c0_74 = arith.constant 0 : index
    %c0_75 = arith.constant 0 : index
    %80 = vector.load %arg5[%c2_73, %c0_74, %c0_75] : memref<4x32x8xf32, #tpu.memory_space<vmem>>, vector<1x32x8xf32>
    %81 = vector.shape_cast %80 : vector<1x32x8xf32> to vector<32x8xf32>
    %cst_76 = arith.constant dense<0.000000e+00> : vector<8x8xf32>
    %82 = tpu.matmul %79, %81, %cst_76 {dimension_numbers = #tpu.dot_dimension_numbers<[1], [0], [0], [1], [0, 0, 1, 1], [], []>} : vector<8x32xf32>, vector<32x8xf32>, vector<8x8xf32> -> vector<8x8xf32>
    %c2_77 = arith.constant 2 : index
    %c0_78 = arith.constant 0 : index
    %c0_79 = arith.constant 0 : index
    %83 = vector.load %arg6[%c2_77, %c0_78, %c0_79] : memref<4x1x8xf32, #tpu.memory_space<vmem>>, vector<1x1x8xf32>
    %84 = vector.shape_cast %83 : vector<1x1x8xf32> to vector<1x8xf32>
    %85 = vector.broadcast %84 : vector<1x8xf32> to vector<8x8xf32>
    %86 = arith.addf %82, %85 : vector<8x8xf32>
    %c2_80 = arith.constant 2 : index
    %c0_81 = arith.constant 0 : index
    %c0_82 = arith.constant 0 : index
    %87 = vector.load %arg7[%c2_80, %c0_81, %c0_82] : memref<4x8x8xf32, #tpu.memory_space<vmem>>, vector<1x8x8xf32>
    %88 = vector.shape_cast %87 : vector<1x8x8xf32> to vector<8x8xf32>
    %89 = vector.shape_cast %86 : vector<8x8xf32> to vector<1x8x8xf32>
    tpu.vector_store %arg7[%c2_80, %c0_81, %c0_82], %89 {strides = array<i32>} : memref<4x8x8xf32, #tpu.memory_space<vmem>>, vector<1x8x8xf32>,
    %c3 = arith.constant 3 : index
    %c0_83 = arith.constant 0 : index
    %c0_84 = arith.constant 0 : index
    %90 = vector.load %arg0[%c3, %c0_83, %c0_84] : memref<4x8x32xf32, #tpu.memory_space<vmem>>, vector<1x8x32xf32>
    %91 = vector.shape_cast %90 : vector<1x8x32xf32> to vector<8x32xf32>
    %c3_85 = arith.constant 3 : index
    %c0_86 = arith.constant 0 : index
    %c0_87 = arith.constant 0 : index
    %92 = vector.load %arg1[%c3_85, %c0_86, %c0_87] : memref<4x32x32xf32, #tpu.memory_space<vmem>>, vector<1x32x32xf32>
    %93 = vector.shape_cast %92 : vector<1x32x32xf32> to vector<32x32xf32>
    %cst_88 = arith.constant dense<0.000000e+00> : vector<8x32xf32>
    %94 = tpu.matmul %91, %93, %cst_88 {dimension_numbers = #tpu.dot_dimension_numbers<[1], [0], [0], [1], [0, 0, 1, 1], [], []>} : vector<8x32xf32>, vector<32x32xf32>, vector<8x32xf32> -> vector<8x32xf32>
    %c3_89 = arith.constant 3 : index
    %c0_90 = arith.constant 0 : index
    %c0_91 = arith.constant 0 : index
    %95 = vector.load %arg2[%c3_89, %c0_90, %c0_91] : memref<4x1x32xf32, #tpu.memory_space<vmem>>, vector<1x1x32xf32>
    %96 = vector.shape_cast %95 : vector<1x1x32xf32> to vector<1x32xf32>
    %97 = vector.broadcast %96 : vector<1x32xf32> to vector<8x32xf32>
    %98 = arith.addf %94, %97 : vector<8x32xf32>
    %cst_92 = arith.constant 0.000000e+00 : f32
    %99 = vector.broadcast %cst_92 : f32 to vector<8x32xf32>
    %100 = arith.maximumf %98, %99 : vector<8x32xf32>
    %c3_93 = arith.constant 3 : index
    %c0_94 = arith.constant 0 : index
    %c0_95 = arith.constant 0 : index
    %101 = vector.load %arg3[%c3_93, %c0_94, %c0_95] : memref<4x32x32xf32, #tpu.memory_space<vmem>>, vector<1x32x32xf32>
    %102 = vector.shape_cast %101 : vector<1x32x32xf32> to vector<32x32xf32>
    %cst_96 = arith.constant dense<0.000000e+00> : vector<8x32xf32>
    %103 = tpu.matmul %100, %102, %cst_96 {dimension_numbers = #tpu.dot_dimension_numbers<[1], [0], [0], [1], [0, 0, 1, 1], [], []>} : vector<8x32xf32>, vector<32x32xf32>, vector<8x32xf32> -> vector<8x32xf32>
    %c3_97 = arith.constant 3 : index
    %c0_98 = arith.constant 0 : index
    %c0_99 = arith.constant 0 : index
    %104 = vector.load %arg4[%c3_97, %c0_98, %c0_99] : memref<4x1x32xf32, #tpu.memory_space<vmem>>, vector<1x1x32xf32>
    %105 = vector.shape_cast %104 : vector<1x1x32xf32> to vector<1x32xf32>
    %106 = vector.broadcast %105 : vector<1x32xf32> to vector<8x32xf32>
    %107 = arith.addf %103, %106 : vector<8x32xf32>
    %cst_100 = arith.constant 0.000000e+00 : f32
    %108 = vector.broadcast %cst_100 : f32 to vector<8x32xf32>
    %109 = arith.maximumf %107, %108 : vector<8x32xf32>
    %c3_101 = arith.constant 3 : index
    %c0_102 = arith.constant 0 : index
    %c0_103 = arith.constant 0 : index
    %110 = vector.load %arg5[%c3_101, %c0_102, %c0_103] : memref<4x32x8xf32, #tpu.memory_space<vmem>>, vector<1x32x8xf32>
    %111 = vector.shape_cast %110 : vector<1x32x8xf32> to vector<32x8xf32>
    %cst_104 = arith.constant dense<0.000000e+00> : vector<8x8xf32>
    %112 = tpu.matmul %109, %111, %cst_104 {dimension_numbers = #tpu.dot_dimension_numbers<[1], [0], [0], [1], [0, 0, 1, 1], [], []>} : vector<8x32xf32>, vector<32x8xf32>, vector<8x8xf32> -> vector<8x8xf32>
    %c3_105 = arith.constant 3 : index
    %c0_106 = arith.constant 0 : index
    %c0_107 = arith.constant 0 : index
    %113 = vector.load %arg6[%c3_105, %c0_106, %c0_107] : memref<4x1x8xf32, #tpu.memory_space<vmem>>, vector<1x1x8xf32>
    %114 = vector.shape_cast %113 : vector<1x1x8xf32> to vector<1x8xf32>
    %115 = vector.broadcast %114 : vector<1x8xf32> to vector<8x8xf32>
    %116 = arith.addf %112, %115 : vector<8x8xf32>
    %c3_108 = arith.constant 3 : index
    %c0_109 = arith.constant 0 : index
    %c0_110 = arith.constant 0 : index
    %117 = vector.load %arg7[%c3_108, %c0_109, %c0_110] : memref<4x8x8xf32, #tpu.memory_space<vmem>>, vector<1x8x8xf32>
    %118 = vector.shape_cast %117 : vector<1x8x8xf32> to vector<8x8xf32>
    %119 = vector.shape_cast %116 : vector<8x8xf32> to vector<1x8x8xf32>
    tpu.vector_store %arg7[%c3_108, %c0_109, %c0_110], %119 {strides = array<i32>} : memref<4x8x8xf32, #tpu.memory_space<vmem>>, vector<1x8x8xf32>,
    return
  }
}

</mosaic_0001>

<llo_original>
// kernel: tpu_custom_call.1
$region0: #{tpu_custom_call.1}
  #allocation0 [shape = 'u32[]', space=smem, size = 0x4, offset = 0x4, fixed_abs, tag = 'smem constant byte address 0x4 - core index']
  #allocation1 [shape = 'u32[144,128]{1,0:T(1,128)}', space=vmem, size = 0x12000, scoped, tag = 'internal scratch']
  %s0 = inlined_call_operand.vmem [shape: f32[4,8,32], index: 0, kind: input, shape index: {}]
  %s1 = inlined_call_operand.vmem [shape: f32[4,32,32], index: 1, kind: input, shape index: {}]
  %s2 = inlined_call_operand.hbm [shape: f32[4,1,32], index: 2, kind: input, shape index: {}]
  %s3 = inlined_call_operand.hbm [shape: f32[4,32,32], index: 3, kind: input, shape index: {}]
  %s4 = inlined_call_operand.vmem [shape: f32[4,1,32], index: 4, kind: input, shape index: {}]
  %s5 = inlined_call_operand.vmem [shape: f32[4,32,8], index: 5, kind: input, shape index: {}]
  %s6 = inlined_call_operand.vmem [shape: f32[4,1,8], index: 6, kind: input, shape index: {}]
  %s7 = inlined_call_operand.hbm [shape: f32[4,8,8], index: 7, kind: output, shape index: {}]
  %s8 = sld [smem:[#allocation0]]
  $region46: #{tpu_custom_call.1} parent=0
    _
  %s10 = ssub.s32 1, %s8
  %s11 = scalar_select 0, %s10, %s8
  $region1: #{tpu_custom_call.1} parent=0
    #allocation2 [shape = 'u8[2048]{0}', space=vmem, size = 0x800, scoped, tag = 'input window, operand 2, single buffered']
    #allocation3 [shape = 's32[1]{0}', space=sflag, size = 0x4, scoped, tag = 'scoped memory for tpu_custom_call.1']
    #allocation4 [shape = 's32[1]{0}', space=sflag, size = 0x4, scoped, tag = 'scoped memory for tpu_custom_call.1']
    #allocation5 [shape = 'u8[65536]{0}', space=vmem, size = 0x10000, scoped, tag = 'input window, operand 3, single buffered']
    #allocation6 [shape = 's32[1]{0}', space=sflag, size = 0x4, scoped, tag = 'scoped memory for tpu_custom_call.1']
    #allocation7 [shape = 'u8[16384]{0}', space=vmem, size = 0x4000, scoped, tag = 'output window, operand 0, single buffered']
    %12 = vsyncpa [#allocation3], 0
    %13 = vsyncpa [#allocation6], 0
    %14 = vsyncpa [#allocation4], 0
    // Predicated region
    $region2: #{tpu_custom_call.1} parent=1 // pred_check
      _
    $region3: #{tpu_custom_call.1} parent=1 // pred_check_branch
      %16 = sbr.rel (0) target = $region5
    $region4: #{tpu_custom_call.1} parent=1 // pred_region
      _
    $region5: #{tpu_custom_call.1} parent=1 // pred_fallthru
      _
    // Predicated region
    $region6: #{tpu_custom_call.1} parent=1 // pred_check
      _
    $region7: #{tpu_custom_call.1} parent=1 // pred_check_branch
      %18 = sbr.rel (0) target = $region9
    $region8: #{tpu_custom_call.1} parent=1 // pred_region
      _
    $region9: #{tpu_custom_call.1} parent=1 // pred_fallthru
      _
    // Predicated region
    $region10: #{tpu_custom_call.1} parent=1 // pred_check
      _
    $region11: #{tpu_custom_call.1} parent=1 // pred_check_branch
      %20 = sbr.rel (0) target = $region13
    $region12: #{tpu_custom_call.1} parent=1 // pred_region
      %s22 = ssub.s32 64, 64
      %23 = vsyncadd [#allocation3], %s22
      %s24 = sshll.u32 [#allocation2], 4
      %s25 = int_to_ptr.vmem [resolvable:$true] %s24
      %30 = dma.hbm_to_vmem [thread:$0]  %s2, 64, %s25, [#allocation3], 16, 16, 1
    $region13: #{tpu_custom_call.1} parent=1 // pred_fallthru
      _
    // Predicated region
    $region14: #{tpu_custom_call.1} parent=1 // pred_check
      _
    $region15: #{tpu_custom_call.1} parent=1 // pred_check_branch
      %32 = sbr.rel (0) target = $region17
    $region16: #{tpu_custom_call.1} parent=1 // pred_region
      %s34 = ssub.s32 2048, 2048
      %35 = vsyncadd [#allocation6], %s34
      %s36 = sshll.u32 [#allocation5], 4
      %s37 = int_to_ptr.vmem [resolvable:$true] %s36
      %42 = dma.hbm_to_vmem [thread:$0]  %s3, 2048, %s37, [#allocation6], 128, 128, 8
    $region17: #{tpu_custom_call.1} parent=1 // pred_fallthru
      _
    // Predicated region
    $region18: #{tpu_custom_call.1} parent=1 // pred_check
      _
    $region19: #{tpu_custom_call.1} parent=1 // pred_check_branch
      %44 = sbr.rel (0) target = $region21
    $region20: #{tpu_custom_call.1} parent=1 // pred_region
      _
    $region21: #{tpu_custom_call.1} parent=1 // pred_fallthru
      _
    // Predicated region
    $region22: #{tpu_custom_call.1} parent=1 // pred_check
      _
    $region23: #{tpu_custom_call.1} parent=1 // pred_check_branch
      %46 = sbr.rel (0) target = $region25
    $region24: #{tpu_custom_call.1} parent=1 // pred_region
      _
    $region25: #{tpu_custom_call.1} parent=1 // pred_fallthru
      _
    // Predicated region
    $region26: #{tpu_custom_call.1} parent=1 // pred_check
      _
    $region27: #{tpu_custom_call.1} parent=1 // pred_check_branch
      %48 = sbr.rel (0) target = $region29
    $region28: #{tpu_custom_call.1} parent=1 // pred_region
      _
    $region29: #{tpu_custom_call.1} parent=1 // pred_fallthru
      _
    // Predicated region
    $region30: #{tpu_custom_call.1} parent=1 // pred_check
      _
    $region31: #{tpu_custom_call.1} parent=1 // pred_check_branch
      %50 = sbr.rel (0) target = $region33
    $region32: #{tpu_custom_call.1} parent=1 // pred_region
      %51 = dma.done [#allocation3], 64
    $region33: #{tpu_custom_call.1} parent=1 // pred_fallthru
      _
    // Predicated region
    $region34: #{tpu_custom_call.1} parent=1 // pred_check
      _
    $region35: #{tpu_custom_call.1} parent=1 // pred_check_branch
      %53 = sbr.rel (0) target = $region37
    $region36: #{tpu_custom_call.1} parent=1 // pred_region
      %54 = dma.done [#allocation6], 2048
    $region37: #{tpu_custom_call.1} parent=1 // pred_fallthru
      _
    %v55 = vld [vmem:[%s0] sm:$0xff]
    %v56 = vld [vmem:[%s1] sm:$0xff]
    %v57 = vld [vmem:[%s1 + $0x8] sm:$0xff]
    %v58 = vld [vmem:[%s1 + $0x10] sm:$0xff]
    %v59 = vld [vmem:[%s1 + $0x18] sm:$0xff]
    %v60 = vld [vmem:[#allocation2] sm:$0x1]
    %v62 = vlaneseq
    %v63 = vshrl.u32 %v62, 7
    %v64 = vsub.s32 0, %v63
    %v65 = vrot.slane %v60, %v64
    %vm67 = vcmask 261120
    %v69 = vsel %vm67, %v55, 0
    %71 = vmatprep.subr.mxu0 0.0
    %72 = vmatpush1.msra.mxu0 0.0
    %73 = vmatprep.subr.mxu0 0.0
    %74 = vmatpush1.msra.mxu0 0.0
    %75 = vmatprep.subr.mxu0 0.0
    %76 = vmatpush1.msra.mxu0 0.0
    %77 = vmatprep.subr.mxu0 0.0
    %78 = vmatpush1.msra.mxu0 0.0
    %79 = vmatprep.subr.mxu0 0.0
    %80 = vmatpush1.msra.mxu0 0.0
    %81 = vmatprep.subr.mxu0 0.0
    %82 = vmatpush1.msra.mxu0 0.0
    %83 = vmatprep.subr.mxu0 0.0
    %84 = vmatpush1.msra.mxu0 0.0
    %85 = vmatprep.subr.mxu0 0.0
    %86 = vmatpush1.msra.mxu0 0.0
    %87 = vmatprep.subr.mxu0 0.0
    %88 = vmatpush1.msra.mxu0 0.0
    %89 = vmatprep.subr.mxu0 0.0
    %90 = vmatpush1.msra.mxu0 0.0
    %91 = vmatprep.subr.mxu0 0.0
    %92 = vmatpush1.msra.mxu0 0.0
    %93 = vmatprep.subr.mxu0 0.0
    %94 = vmatpush1.msra.mxu0 0.0
    %95 = vmatprep.subr.mxu0 0.0
    %96 = vmatpush1.msra.mxu0 %v59
    %97 = vmatprep.subr.mxu0 0.0
    %98 = vmatpush1.msra.mxu0 %v58
    %99 = vmatprep.subr.mxu0 0.0
    %100 = vmatpush1.msra.mxu0 %v57
    %101 = vmatprep.subr.mxu0 0.0
    %102 = vmatpush1.msra.mxu0 %v56
    %103 = vmatprep.subr.mxu0 0.0
    %104 = vmatpush2.msra.mxu0 0.0
    %105 = vmatprep.subr.mxu0 0.0
    %106 = vmatpush2.msra.mxu0 0.0
    %107 = vmatprep.subr.mxu0 0.0
    %108 = vmatpush2.msra.mxu0 0.0
    %109 = vmatprep.subr.mxu0 0.0
    %110 = vmatpush2.msra.mxu0 0.0
    %111 = vmatprep.subr.mxu0 0.0
    %112 = vmatpush2.msra.mxu0 0.0
    %113 = vmatprep.subr.mxu0 0.0
    %114 = vmatpush2.msra.mxu0 0.0
    %115 = vmatprep.subr.mxu0 0.0
    %116 = vmatpush2.msra.mxu0 0.0
    %117 = vmatprep.subr.mxu0 0.0
    %118 = vmatpush2.msra.mxu0 0.0
    %119 = vmatprep.subr.mxu0 0.0
    %120 = vmatpush2.msra.mxu0 0.0
    %121 = vmatprep.subr.mxu0 0.0
    %122 = vmatpush2.msra.mxu0 0.0
    %123 = vmatprep.subr.mxu0 0.0
    %124 = vmatpush2.msra.mxu0 0.0
    %125 = vmatprep.subr.mxu0 0.0
    %126 = vmatpush2.msra.mxu0 0.0
    %127 = vmatprep.subr.mxu0 0.0
    %128 = vmatpush2.msra.mxu0 0.0
    %129 = vmatprep.subr.mxu0 0.0
    %130 = vmatpush2.msra.mxu0 0.0
    %131 = vmatprep.subr.mxu0 0.0
    %132 = vmatpush2.msra.mxu0 0.0
    %133 = vmatprep.subr.mxu0 0.0
    %134 = vmatpush2.msra.mxu0 0.0
    %135 = vmatprep.mubr.f32.mxu0 0.0
    %136 = vmatmul.mubr.f32.gmra.mxu0 %v69
    %v137 = vpop.f32.mrf.mxu0
    %v138 = vadd.f32 %v65, %v137
    %v139 = vpop.f32.mrf.mxu0
    %140 = vdwg.mxu0
    %v141 = vmax.f32 %v138, 0.0
    %v142 = vld [vmem:[#allocation5] sm:$0xff]
    %v143 = vld [vmem:[#allocation5 + $0x8] sm:$0xff]
    %v144 = vld [vmem:[#allocation5 + $0x10] sm:$0xff]
    %v145 = vld [vmem:[#allocation5 + $0x18] sm:$0xff]
    %v146 = vld [vmem:[%s4] sm:$0x1]
    %v148 = vlaneseq
    %v149 = vshrl.u32 %v148, 7
    %v150 = vsub.s32 0, %v149
    %v151 = vrot.slane %v146, %v150
    %v154 = vsel %vm67, %v141, 0
    %156 = vmatprep.subr.mxu0 0.0
    %157 = vmatpush1.msra.mxu0 0.0
    %158 = vmatprep.subr.mxu0 0.0
    %159 = vmatpush1.msra.mxu0 0.0
    %160 = vmatprep.subr.mxu0 0.0
    %161 = vmatpush1.msra.mxu0 0.0
    %162 = vmatprep.subr.mxu0 0.0
    %163 = vmatpush1.msra.mxu0 0.0
    %164 = vmatprep.subr.mxu0 0.0
    %165 = vmatpush1.msra.mxu0 0.0
    %166 = vmatprep.subr.mxu0 0.0
    %167 = vmatpush1.msra.mxu0 0.0
    %168 = vmatprep.subr.mxu0 0.0
    %169 = vmatpush1.msra.mxu0 0.0
    %170 = vmatprep.subr.mxu0 0.0
    %171 = vmatpush1.msra.mxu0 0.0
    %172 = vmatprep.subr.mxu0 0.0
    %173 = vmatpush1.msra.mxu0 0.0
    %174 = vmatprep.subr.mxu0 0.0
    %175 = vmatpush1.msra.mxu0 0.0
    %176 = vmatprep.subr.mxu0 0.0
    %177 = vmatpush1.msra.mxu0 0.0
    %178 = vmatprep.subr.mxu0 0.0
    %179 = vmatpush1.msra.mxu0 0.0
    %180 = vmatprep.subr.mxu0 0.0
    %181 = vmatpush1.msra.mxu0 %v145
    %182 = vmatprep.subr.mxu0 0.0
    %183 = vmatpush1.msra.mxu0 %v144
    %184 = vmatprep.subr.mxu0 0.0
    %185 = vmatpush1.msra.mxu0 %v143
    %186 = vmatprep.subr.mxu0 0.0
    %187 = vmatpush1.msra.mxu0 %v142
    %188 = vmatprep.subr.mxu0 0.0
    %189 = vmatpush2.msra.mxu0 0.0
    %190 = vmatprep.subr.mxu0 0.0
    %191 = vmatpush2.msra.mxu0 0.0
    %192 = vmatprep.subr.mxu0 0.0
    %193 = vmatpush2.msra.mxu0 0.0
    %194 = vmatprep.subr.mxu0 0.0
    %195 = vmatpush2.msra.mxu0 0.0
    %196 = vmatprep.subr.mxu0 0.0
    %197 = vmatpush2.msra.mxu0 0.0
    %198 = vmatprep.subr.mxu0 0.0
    %199 = vmatpush2.msra.mxu0 0.0
    %200 = vmatprep.subr.mxu0 0.0
    %201 = vmatpush2.msra.mxu0 0.0
    %202 = vmatprep.subr.mxu0 0.0
    %203 = vmatpush2.msra.mxu0 0.0
    %204 = vmatprep.subr.mxu0 0.0
    %205 = vmatpush2.msra.mxu0 0.0
    %206 = vmatprep.subr.mxu0 0.0
    %207 = vmatpush2.msra.mxu0 0.0
    %208 = vmatprep.subr.mxu0 0.0
    %209 = vmatpush2.msra.mxu0 0.0
    %210 = vmatprep.subr.mxu0 0.0
    %211 = vmatpush2.msra.mxu0 0.0
    %212 = vmatprep.subr.mxu0 0.0
    %213 = vmatpush2.msra.mxu0 0.0
    %214 = vmatprep.subr.mxu0 0.0
    %215 = vmatpush2.msra.mxu0 0.0
    %216 = vmatprep.subr.mxu0 0.0
    %217 = vmatpush2.msra.mxu0 0.0
    %218 = vmatprep.subr.mxu0 0.0
    %219 = vmatpush2.msra.mxu0 0.0
    %220 = vmatprep.mubr.f32.mxu0 0.0
    %221 = vmatmul.mubr.f32.gmra.mxu0 %v154
    %v222 = vpop.f32.mrf.mxu0
    %v223 = vadd.f32 %v151, %v222
    %v224 = vpop.f32.mrf.mxu0
    %225 = vdwg.mxu0
    %v226 = vmax.f32 %v223, 0.0
    %v227 = vld [vmem:[%s5] sm:$0xff]
    %v228 = vld [vmem:[%s5 + $0x8] sm:$0xff]
    %v229 = vld [vmem:[%s5 + $0x10] sm:$0xff]
    %v230 = vld [vmem:[%s5 + $0x18] sm:$0xff]
    %v231 = vld [vmem:[%s6] sm:$0x1]
    %v233 = vlaneseq
    %v234 = vshrl.u32 %v233, 7
    %v235 = vsub.s32 0, %v234
    %v236 = vrot.slane %v231, %v235
    %v239 = vsel %vm67, %v226, 0
    %241 = vmatprep.subr.mxu0 0.0
    %242 = vmatpush1.msra.mxu0 0.0
    %243 = vmatprep.subr.mxu0 0.0
    %244 = vmatpush1.msra.mxu0 0.0
    %245 = vmatprep.subr.mxu0 0.0
    %246 = vmatpush1.msra.mxu0 0.0
    %247 = vmatprep.subr.mxu0 0.0
    %248 = vmatpush1.msra.mxu0 0.0
    %249 = vmatprep.subr.mxu0 0.0
    %250 = vmatpush1.msra.mxu0 0.0
    %251 = vmatprep.subr.mxu0 0.0
    %252 = vmatpush1.msra.mxu0 0.0
    %253 = vmatprep.subr.mxu0 0.0
    %254 = vmatpush1.msra.mxu0 0.0
    %255 = vmatprep.subr.mxu0 0.0
    %256 = vmatpush1.msra.mxu0 0.0
    %257 = vmatprep.subr.mxu0 0.0
    %258 = vmatpush1.msra.mxu0 0.0
    %259 = vmatprep.subr.mxu0 0.0
    %260 = vmatpush1.msra.mxu0 0.0
    %261 = vmatprep.subr.mxu0 0.0
    %262 = vmatpush1.msra.mxu0 0.0
    %263 = vmatprep.subr.mxu0 0.0
    %264 = vmatpush1.msra.mxu0 0.0
    %265 = vmatprep.subr.mxu0 0.0
    %266 = vmatpush1.msra.mxu0 %v230
    %267 = vmatprep.subr.mxu0 0.0
    %268 = vmatpush1.msra.mxu0 %v229
    %269 = vmatprep.subr.mxu0 0.0
    %270 = vmatpush1.msra.mxu0 %v228
    %271 = vmatprep.subr.mxu0 0.0
    %272 = vmatpush1.msra.mxu0 %v227
    %273 = vmatprep.subr.mxu0 0.0
    %274 = vmatpush2.msra.mxu0 0.0
    %275 = vmatprep.subr.mxu0 0.0
    %276 = vmatpush2.msra.mxu0 0.0
    %277 = vmatprep.subr.mxu0 0.0
    %278 = vmatpush2.msra.mxu0 0.0
    %279 = vmatprep.subr.mxu0 0.0
    %280 = vmatpush2.msra.mxu0 0.0
    %281 = vmatprep.subr.mxu0 0.0
    %282 = vmatpush2.msra.mxu0 0.0
    %283 = vmatprep.subr.mxu0 0.0
    %284 = vmatpush2.msra.mxu0 0.0
    %285 = vmatprep.subr.mxu0 0.0
    %286 = vmatpush2.msra.mxu0 0.0
    %287 = vmatprep.subr.mxu0 0.0
    %288 = vmatpush2.msra.mxu0 0.0
    %289 = vmatprep.subr.mxu0 0.0
    %290 = vmatpush2.msra.mxu0 0.0
    %291 = vmatprep.subr.mxu0 0.0
    %292 = vmatpush2.msra.mxu0 0.0
    %293 = vmatprep.subr.mxu0 0.0
    %294 = vmatpush2.msra.mxu0 0.0
    %295 = vmatprep.subr.mxu0 0.0
    %296 = vmatpush2.msra.mxu0 0.0
    %297 = vmatprep.subr.mxu0 0.0
    %298 = vmatpush2.msra.mxu0 0.0
    %299 = vmatprep.subr.mxu0 0.0
    %300 = vmatpush2.msra.mxu0 0.0
    %301 = vmatprep.subr.mxu0 0.0
    %302 = vmatpush2.msra.mxu0 0.0
    %303 = vmatprep.subr.mxu0 0.0
    %304 = vmatpush2.msra.mxu0 0.0
    %305 = vmatprep.mubr.f32.mxu0 0.0
    %306 = vmatmul.mubr.f32.gmra.mxu0 %v239
    %v307 = vpop.f32.mrf.mxu0
    %v308 = vadd.f32 %v236, %v307
    %v309 = vpop.f32.mrf.mxu0
    %310 = vdwg.mxu0
    %vm311 = vcmask 64512
    %312 = vst.msk [vmem:[#allocation7] sm:$0xff] %vm311, %v308
    %s313 = scalar_lea.vmem %s0, 8
    %v314 = vld [vmem:[%s313] sm:$0xff]
    %s315 = scalar_lea.vmem %s1, 32
    %v316 = vld [vmem:[%s315] sm:$0xff]
    %v317 = vld [vmem:[%s315 + $0x8] sm:$0xff]
    %v318 = vld [vmem:[%s315 + $0x10] sm:$0xff]
    %v319 = vld [vmem:[%s315 + $0x18] sm:$0xff]
    %s320 = scalar_lea.vmem [#allocation2], 1
    %v321 = vld [vmem:[%s320] sm:$0x1]
    %v323 = vlaneseq
    %v324 = vshrl.u32 %v323, 7
    %v325 = vsub.s32 0, %v324
    %v326 = vrot.slane %v321, %v325
    %v329 = vsel %vm67, %v314, 0
    %331 = vmatprep.subr.mxu0 0.0
    %332 = vmatpush1.msra.mxu0 0.0
    %333 = vmatprep.subr.mxu0 0.0
    %334 = vmatpush1.msra.mxu0 0.0
    %335 = vmatprep.subr.mxu0 0.0
    %336 = vmatpush1.msra.mxu0 0.0
    %337 = vmatprep.subr.mxu0 0.0
    %338 = vmatpush1.msra.mxu0 0.0
    %339 = vmatprep.subr.mxu0 0.0
    %340 = vmatpush1.msra.mxu0 0.0
    %341 = vmatprep.subr.mxu0 0.0
    %342 = vmatpush1.msra.mxu0 0.0
    %343 = vmatprep.subr.mxu0 0.0
    %344 = vmatpush1.msra.mxu0 0.0
    %345 = vmatprep.subr.mxu0 0.0
    %346 = vmatpush1.msra.mxu0 0.0
    %347 = vmatprep.subr.mxu0 0.0
    %348 = vmatpush1.msra.mxu0 0.0
    %349 = vmatprep.subr.mxu0 0.0
    %350 = vmatpush1.msra.mxu0 0.0
    %351 = vmatprep.subr.mxu0 0.0
    %352 = vmatpush1.msra.mxu0 0.0
    %353 = vmatprep.subr.mxu0 0.0
    %354 = vmatpush1.msra.mxu0 0.0
    %355 = vmatprep.subr.mxu0 0.0
    %356 = vmatpush1.msra.mxu0 %v319
    %357 = vmatprep.subr.mxu0 0.0
    %358 = vmatpush1.msra.mxu0 %v318
    %359 = vmatprep.subr.mxu0 0.0
    %360 = vmatpush1.msra.mxu0 %v317
    %361 = vmatprep.subr.mxu0 0.0
    %362 = vmatpush1.msra.mxu0 %v316
    %363 = vmatprep.subr.mxu0 0.0
    %364 = vmatpush2.msra.mxu0 0.0
    %365 = vmatprep.subr.mxu0 0.0
    %366 = vmatpush2.msra.mxu0 0.0
    %367 = vmatprep.subr.mxu0 0.0
    %368 = vmatpush2.msra.mxu0 0.0
    %369 = vmatprep.subr.mxu0 0.0
    %370 = vmatpush2.msra.mxu0 0.0
    %371 = vmatprep.subr.mxu0 0.0
    %372 = vmatpush2.msra.mxu0 0.0
    %373 = vmatprep.subr.mxu0 0.0
    %374 = vmatpush2.msra.mxu0 0.0
    %375 = vmatprep.subr.mxu0 0.0
    %376 = vmatpush2.msra.mxu0 0.0
    %377 = vmatprep.subr.mxu0 0.0
    %378 = vmatpush2.msra.mxu0 0.0
    %379 = vmatprep.subr.mxu0 0.0
    %380 = vmatpush2.msra.mxu0 0.0
    %381 = vmatprep.subr.mxu0 0.0
    %382 = vmatpush2.msra.mxu0 0.0
    %383 = vmatprep.subr.mxu0 0.0
    %384 = vmatpush2.msra.mxu0 0.0
    %385 = vmatprep.subr.mxu0 0.0
    %386 = vmatpush2.msra.mxu0 0.0
    %387 = vmatprep.subr.mxu0 0.0
    %388 = vmatpush2.msra.mxu0 0.0
    %389 = vmatprep.subr.mxu0 0.0
    %390 = vmatpush2.msra.mxu0 0.0
    %391 = vmatprep.subr.mxu0 0.0
    %392 = vmatpush2.msra.mxu0 0.0
    %393 = vmatprep.subr.mxu0 0.0
    %394 = vmatpush2.msra.mxu0 0.0
    %395 = vmatprep.mubr.f32.mxu0 0.0
    %396 = vmatmul.mubr.f32.gmra.mxu0 %v329
    %v397 = vpop.f32.mrf.mxu0
    %v398 = vadd.f32 %v326, %v397
    %v399 = vpop.f32.mrf.mxu0
    %400 = vdwg.mxu0
    %v401 = vmax.f32 %v398, 0.0
    %s402 = scalar_lea.vmem [#allocation5], 32
    %v403 = vld [vmem:[%s402] sm:$0xff]
    %v404 = vld [vmem:[%s402 + $0x8] sm:$0xff]
    %v405 = vld [vmem:[%s402 + $0x10] sm:$0xff]
    %v406 = vld [vmem:[%s402 + $0x18] sm:$0xff]
    %s407 = scalar_lea.vmem %s4, 1
    %v408 = vld [vmem:[%s407] sm:$0x1]
    %v410 = vlaneseq
    %v411 = vshrl.u32 %v410, 7
    %v412 = vsub.s32 0, %v411
    %v413 = vrot.slane %v408, %v412
    %v416 = vsel %vm67, %v401, 0
    %418 = vmatprep.subr.mxu0 0.0
    %419 = vmatpush1.msra.mxu0 0.0
    %420 = vmatprep.subr.mxu0 0.0
    %421 = vmatpush1.msra.mxu0 0.0
    %422 = vmatprep.subr.mxu0 0.0
    %423 = vmatpush1.msra.mxu0 0.0
    %424 = vmatprep.subr.mxu0 0.0
    %425 = vmatpush1.msra.mxu0 0.0
    %426 = vmatprep.subr.mxu0 0.0
    %427 = vmatpush1.msra.mxu0 0.0
    %428 = vmatprep.subr.mxu0 0.0
    %429 = vmatpush1.msra.mxu0 0.0
    %430 = vmatprep.subr.mxu0 0.0
    %431 = vmatpush1.msra.mxu0 0.0
    %432 = vmatprep.subr.mxu0 0.0
    %433 = vmatpush1.msra.mxu0 0.0
    %434 = vmatprep.subr.mxu0 0.0
    %435 = vmatpush1.msra.mxu0 0.0
    %436 = vmatprep.subr.mxu0 0.0
    %437 = vmatpush1.msra.mxu0 0.0
    %438 = vmatprep.subr.mxu0 0.0
    %439 = vmatpush1.msra.mxu0 0.0
    %440 = vmatprep.subr.mxu0 0.0
    %441 = vmatpush1.msra.mxu0 0.0
    %442 = vmatprep.subr.mxu0 0.0
    %443 = vmatpush1.msra.mxu0 %v406
    %444 = vmatprep.subr.mxu0 0.0
    %445 = vmatpush1.msra.mxu0 %v405
    %446 = vmatprep.subr.mxu0 0.0
    %447 = vmatpush1.msra.mxu0 %v404
    %448 = vmatprep.subr.mxu0 0.0
    %449 = vmatpush1.msra.mxu0 %v403
    %450 = vmatprep.subr.mxu0 0.0
    %451 = vmatpush2.msra.mxu0 0.0
    %452 = vmatprep.subr.mxu0 0.0
    %453 = vmatpush2.msra.mxu0 0.0
    %454 = vmatprep.subr.mxu0 0.0
    %455 = vmatpush2.msra.mxu0 0.0
    %456 = vmatprep.subr.mxu0 0.0
    %457 = vmatpush2.msra.mxu0 0.0
    %458 = vmatprep.subr.mxu0 0.0
    %459 = vmatpush2.msra.mxu0 0.0
    %460 = vmatprep.subr.mxu0 0.0
    %461 = vmatpush2.msra.mxu0 0.0
    %462 = vmatprep.subr.mxu0 0.0
    %463 = vmatpush2.msra.mxu0 0.0
    %464 = vmatprep.subr.mxu0 0.0
    %465 = vmatpush2.msra.mxu0 0.0
    %466 = vmatprep.subr.mxu0 0.0
    %467 = vmatpush2.msra.mxu0 0.0
    %468 = vmatprep.subr.mxu0 0.0
    %469 = vmatpush2.msra.mxu0 0.0
    %470 = vmatprep.subr.mxu0 0.0
    %471 = vmatpush2.msra.mxu0 0.0
    %472 = vmatprep.subr.mxu0 0.0
    %473 = vmatpush2.msra.mxu0 0.0
    %474 = vmatprep.subr.mxu0 0.0
    %475 = vmatpush2.msra.mxu0 0.0
    %476 = vmatprep.subr.mxu0 0.0
    %477 = vmatpush2.msra.mxu0 0.0
    %478 = vmatprep.subr.mxu0 0.0
    %479 = vmatpush2.msra.mxu0 0.0
    %480 = vmatprep.subr.mxu0 0.0
    %481 = vmatpush2.msra.mxu0 0.0
    %482 = vmatprep.mubr.f32.mxu0 0.0
    %483 = vmatmul.mubr.f32.gmra.mxu0 %v416
    %v484 = vpop.f32.mrf.mxu0
    %v485 = vadd.f32 %v413, %v484
    %v486 = vpop.f32.mrf.mxu0
    %487 = vdwg.mxu0
    %v488 = vmax.f32 %v485, 0.0
    %s489 = scalar_lea.vmem %s5, 32
    %v490 = vld [vmem:[%s489] sm:$0xff]
    %v491 = vld [vmem:[%s489 + $0x8] sm:$0xff]
    %v492 = vld [vmem:[%s489 + $0x10] sm:$0xff]
    %v493 = vld [vmem:[%s489 + $0x18] sm:$0xff]
    %s494 = scalar_lea.vmem %s6, 1
    %v495 = vld [vmem:[%s494] sm:$0x1]
    %v497 = vlaneseq
    %v498 = vshrl.u32 %v497, 7
    %v499 = vsub.s32 0, %v498
    %v500 = vrot.slane %v495, %v499
    %v503 = vsel %vm67, %v488, 0
    %505 = vmatprep.subr.mxu0 0.0
    %506 = vmatpush1.msra.mxu0 0.0
    %507 = vmatprep.subr.mxu0 0.0
    %508 = vmatpush1.msra.mxu0 0.0
    %509 = vmatprep.subr.mxu0 0.0
    %510 = vmatpush1.msra.mxu0 0.0
    %511 = vmatprep.subr.mxu0 0.0
    %512 = vmatpush1.msra.mxu0 0.0
    %513 = vmatprep.subr.mxu0 0.0
    %514 = vmatpush1.msra.mxu0 0.0
    %515 = vmatprep.subr.mxu0 0.0
    %516 = vmatpush1.msra.mxu0 0.0
    %517 = vmatprep.subr.mxu0 0.0
    %518 = vmatpush1.msra.mxu0 0.0
    %519 = vmatprep.subr.mxu0 0.0
    %520 = vmatpush1.msra.mxu0 0.0
    %521 = vmatprep.subr.mxu0 0.0
    %522 = vmatpush1.msra.mxu0 0.0
    %523 = vmatprep.subr.mxu0 0.0
    %524 = vmatpush1.msra.mxu0 0.0
    %525 = vmatprep.subr.mxu0 0.0
    %526 = vmatpush1.msra.mxu0 0.0
    %527 = vmatprep.subr.mxu0 0.0
    %528 = vmatpush1.msra.mxu0 0.0
    %529 = vmatprep.subr.mxu0 0.0
    %530 = vmatpush1.msra.mxu0 %v493
    %531 = vmatprep.subr.mxu0 0.0
    %532 = vmatpush1.msra.mxu0 %v492
    %533 = vmatprep.subr.mxu0 0.0
    %534 = vmatpush1.msra.mxu0 %v491
    %535 = vmatprep.subr.mxu0 0.0
    %536 = vmatpush1.msra.mxu0 %v490
    %537 = vmatprep.subr.mxu0 0.0
    %538 = vmatpush2.msra.mxu0 0.0
    %539 = vmatprep.subr.mxu0 0.0
    %540 = vmatpush2.msra.mxu0 0.0
    %541 = vmatprep.subr.mxu0 0.0
    %542 = vmatpush2.msra.mxu0 0.0
    %543 = vmatprep.subr.mxu0 0.0
    %544 = vmatpush2.msra.mxu0 0.0
    %545 = vmatprep.subr.mxu0 0.0
    %546 = vmatpush2.msra.mxu0 0.0
    %547 = vmatprep.subr.mxu0 0.0
    %548 = vmatpush2.msra.mxu0 0.0
    %549 = vmatprep.subr.mxu0 0.0
    %550 = vmatpush2.msra.mxu0 0.0
    %551 = vmatprep.subr.mxu0 0.0
    %552 = vmatpush2.msra.mxu0 0.0
    %553 = vmatprep.subr.mxu0 0.0
    %554 = vmatpush2.msra.mxu0 0.0
    %555 = vmatprep.subr.mxu0 0.0
    %556 = vmatpush2.msra.mxu0 0.0
    %557 = vmatprep.subr.mxu0 0.0
    %558 = vmatpush2.msra.mxu0 0.0
    %559 = vmatprep.subr.mxu0 0.0
    %560 = vmatpush2.msra.mxu0 0.0
    %561 = vmatprep.subr.mxu0 0.0
    %562 = vmatpush2.msra.mxu0 0.0
    %563 = vmatprep.subr.mxu0 0.0
    %564 = vmatpush2.msra.mxu0 0.0
    %565 = vmatprep.subr.mxu0 0.0
    %566 = vmatpush2.msra.mxu0 0.0
    %567 = vmatprep.subr.mxu0 0.0
    %568 = vmatpush2.msra.mxu0 0.0
    %569 = vmatprep.mubr.f32.mxu0 0.0
    %570 = vmatmul.mubr.f32.gmra.mxu0 %v503
    %v571 = vpop.f32.mrf.mxu0
    %v572 = vadd.f32 %v500, %v571
    %v573 = vpop.f32.mrf.mxu0
    %574 = vdwg.mxu0
    %s575 = scalar_lea.vmem [#allocation7], 8
    %576 = vst.msk [vmem:[%s575] sm:$0xff] %vm311, %v572
    %s577 = scalar_lea.vmem %s0, 16
    %v578 = vld [vmem:[%s577] sm:$0xff]
    %s579 = scalar_lea.vmem %s1, 64
    %v580 = vld [vmem:[%s579] sm:$0xff]
    %v581 = vld [vmem:[%s579 + $0x8] sm:$0xff]
    %v582 = vld [vmem:[%s579 + $0x10] sm:$0xff]
    %v583 = vld [vmem:[%s579 + $0x18] sm:$0xff]
    %s584 = scalar_lea.vmem [#allocation2], 2
    %v585 = vld [vmem:[%s584] sm:$0x1]
    %v587 = vlaneseq
    %v588 = vshrl.u32 %v587, 7
    %v589 = vsub.s32 0, %v588
    %v590 = vrot.slane %v585, %v589
    %v593 = vsel %vm67, %v578, 0
    %595 = vmatprep.subr.mxu0 0.0
    %596 = vmatpush1.msra.mxu0 0.0
    %597 = vmatprep.subr.mxu0 0.0
    %598 = vmatpush1.msra.mxu0 0.0
    %599 = vmatprep.subr.mxu0 0.0
    %600 = vmatpush1.msra.mxu0 0.0
    %601 = vmatprep.subr.mxu0 0.0
    %602 = vmatpush1.msra.mxu0 0.0
    %603 = vmatprep.subr.mxu0 0.0
    %604 = vmatpush1.msra.mxu0 0.0
    %605 = vmatprep.subr.mxu0 0.0
    %606 = vmatpush1.msra.mxu0 0.0
    %607 = vmatprep.subr.mxu0 0.0
    %608 = vmatpush1.msra.mxu0 0.0
    %609 = vmatprep.subr.mxu0 0.0
    %610 = vmatpush1.msra.mxu0 0.0
    %611 = vmatprep.subr.mxu0 0.0
    %612 = vmatpush1.msra.mxu0 0.0
    %613 = vmatprep.subr.mxu0 0.0
    %614 = vmatpush1.msra.mxu0 0.0
    %615 = vmatprep.subr.mxu0 0.0
    %616 = vmatpush1.msra.mxu0 0.0
    %617 = vmatprep.subr.mxu0 0.0
    %618 = vmatpush1.msra.mxu0 0.0
    %619 = vmatprep.subr.mxu0 0.0
    %620 = vmatpush1.msra.mxu0 %v583
    %621 = vmatprep.subr.mxu0 0.0
    %622 = vmatpush1.msra.mxu0 %v582
    %623 = vmatprep.subr.mxu0 0.0
    %624 = vmatpush1.msra.mxu0 %v581
    %625 = vmatprep.subr.mxu0 0.0
    %626 = vmatpush1.msra.mxu0 %v580
    %627 = vmatprep.subr.mxu0 0.0
    %628 = vmatpush2.msra.mxu0 0.0
    %629 = vmatprep.subr.mxu0 0.0
    %630 = vmatpush2.msra.mxu0 0.0
    %631 = vmatprep.subr.mxu0 0.0
    %632 = vmatpush2.msra.mxu0 0.0
    %633 = vmatprep.subr.mxu0 0.0
    %634 = vmatpush2.msra.mxu0 0.0
    %635 = vmatprep.subr.mxu0 0.0
    %636 = vmatpush2.msra.mxu0 0.0
    %637 = vmatprep.subr.mxu0 0.0
    %638 = vmatpush2.msra.mxu0 0.0
    %639 = vmatprep.subr.mxu0 0.0
    %640 = vmatpush2.msra.mxu0 0.0
    %641 = vmatprep.subr.mxu0 0.0
    %642 = vmatpush2.msra.mxu0 0.0
    %643 = vmatprep.subr.mxu0 0.0
    %644 = vmatpush2.msra.mxu0 0.0
    %645 = vmatprep.subr.mxu0 0.0
    %646 = vmatpush2.msra.mxu0 0.0
    %647 = vmatprep.subr.mxu0 0.0
    %648 = vmatpush2.msra.mxu0 0.0
    %649 = vmatprep.subr.mxu0 0.0
    %650 = vmatpush2.msra.mxu0 0.0
    %651 = vmatprep.subr.mxu0 0.0
    %652 = vmatpush2.msra.mxu0 0.0
    %653 = vmatprep.subr.mxu0 0.0
    %654 = vmatpush2.msra.mxu0 0.0
    %655 = vmatprep.subr.mxu0 0.0
    %656 = vmatpush2.msra.mxu0 0.0
    %657 = vmatprep.subr.mxu0 0.0
    %658 = vmatpush2.msra.mxu0 0.0
    %659 = vmatprep.mubr.f32.mxu0 0.0
    %660 = vmatmul.mubr.f32.gmra.mxu0 %v593
    %v661 = vpop.f32.mrf.mxu0
    %v662 = vadd.f32 %v590, %v661
    %v663 = vpop.f32.mrf.mxu0
    %664 = vdwg.mxu0
    %v665 = vmax.f32 %v662, 0.0
    %s666 = scalar_lea.vmem [#allocation5], 64
    %v667 = vld [vmem:[%s666] sm:$0xff]
    %v668 = vld [vmem:[%s666 + $0x8] sm:$0xff]
    %v669 = vld [vmem:[%s666 + $0x10] sm:$0xff]
    %v670 = vld [vmem:[%s666 + $0x18] sm:$0xff]
    %s671 = scalar_lea.vmem %s4, 2
    %v672 = vld [vmem:[%s671] sm:$0x1]
    %v674 = vlaneseq
    %v675 = vshrl.u32 %v674, 7
    %v676 = vsub.s32 0, %v675
    %v677 = vrot.slane %v672, %v676
    %v680 = vsel %vm67, %v665, 0
    %682 = vmatprep.subr.mxu0 0.0
    %683 = vmatpush1.msra.mxu0 0.0
    %684 = vmatprep.subr.mxu0 0.0
    %685 = vmatpush1.msra.mxu0 0.0
    %686 = vmatprep.subr.mxu0 0.0
    %687 = vmatpush1.msra.mxu0 0.0
    %688 = vmatprep.subr.mxu0 0.0
    %689 = vmatpush1.msra.mxu0 0.0
    %690 = vmatprep.subr.mxu0 0.0
    %691 = vmatpush1.msra.mxu0 0.0
    %692 = vmatprep.subr.mxu0 0.0
    %693 = vmatpush1.msra.mxu0 0.0
    %694 = vmatprep.subr.mxu0 0.0
    %695 = vmatpush1.msra.mxu0 0.0
    %696 = vmatprep.subr.mxu0 0.0
    %697 = vmatpush1.msra.mxu0 0.0
    %698 = vmatprep.subr.mxu0 0.0
    %699 = vmatpush1.msra.mxu0 0.0
    %700 = vmatprep.subr.mxu0 0.0
    %701 = vmatpush1.msra.mxu0 0.0
    %702 = vmatprep.subr.mxu0 0.0
    %703 = vmatpush1.msra.mxu0 0.0
    %704 = vmatprep.subr.mxu0 0.0
    %705 = vmatpush1.msra.mxu0 0.0
    %706 = vmatprep.subr.mxu0 0.0
    %707 = vmatpush1.msra.mxu0 %v670
    %708 = vmatprep.subr.mxu0 0.0
    %709 = vmatpush1.msra.mxu0 %v669
    %710 = vmatprep.subr.mxu0 0.0
    %711 = vmatpush1.msra.mxu0 %v668
    %712 = vmatprep.subr.mxu0 0.0
    %713 = vmatpush1.msra.mxu0 %v667
    %714 = vmatprep.subr.mxu0 0.0
    %715 = vmatpush2.msra.mxu0 0.0
    %716 = vmatprep.subr.mxu0 0.0
    %717 = vmatpush2.msra.mxu0 0.0
    %718 = vmatprep.subr.mxu0 0.0
    %719 = vmatpush2.msra.mxu0 0.0
    %720 = vmatprep.subr.mxu0 0.0
    %721 = vmatpush2.msra.mxu0 0.0
    %722 = vmatprep.subr.mxu0 0.0
    %723 = vmatpush2.msra.mxu0 0.0
    %724 = vmatprep.subr.mxu0 0.0
    %725 = vmatpush2.msra.mxu0 0.0
    %726 = vmatprep.subr.mxu0 0.0
    %727 = vmatpush2.msra.mxu0 0.0
    %728 = vmatprep.subr.mxu0 0.0
    %729 = vmatpush2.msra.mxu0 0.0
    %730 = vmatprep.subr.mxu0 0.0
    %731 = vmatpush2.msra.mxu0 0.0
    %732 = vmatprep.subr.mxu0 0.0
    %733 = vmatpush2.msra.mxu0 0.0
    %734 = vmatprep.subr.mxu0 0.0
    %735 = vmatpush2.msra.mxu0 0.0
    %736 = vmatprep.subr.mxu0 0.0
    %737 = vmatpush2.msra.mxu0 0.0
    %738 = vmatprep.subr.mxu0 0.0
    %739 = vmatpush2.msra.mxu0 0.0
    %740 = vmatprep.subr.mxu0 0.0
    %741 = vmatpush2.msra.mxu0 0.0
    %742 = vmatprep.subr.mxu0 0.0
    %743 = vmatpush2.msra.mxu0 0.0
    %744 = vmatprep.subr.mxu0 0.0
    %745 = vmatpush2.msra.mxu0 0.0
    %746 = vmatprep.mubr.f32.mxu0 0.0
    %747 = vmatmul.mubr.f32.gmra.mxu0 %v680
    %v748 = vpop.f32.mrf.mxu0
    %v749 = vadd.f32 %v677, %v748
    %v750 = vpop.f32.mrf.mxu0
    %751 = vdwg.mxu0
    %v752 = vmax.f32 %v749, 0.0
    %s753 = scalar_lea.vmem %s5, 64
    %v754 = vld [vmem:[%s753] sm:$0xff]
    %v755 = vld [vmem:[%s753 + $0x8] sm:$0xff]
    %v756 = vld [vmem:[%s753 + $0x10] sm:$0xff]
    %v757 = vld [vmem:[%s753 + $0x18] sm:$0xff]
    %s758 = scalar_lea.vmem %s6, 2
    %v759 = vld [vmem:[%s758] sm:$0x1]
    %v761 = vlaneseq
    %v762 = vshrl.u32 %v761, 7
    %v763 = vsub.s32 0, %v762
    %v764 = vrot.slane %v759, %v763
    %v767 = vsel %vm67, %v752, 0
    %769 = vmatprep.subr.mxu0 0.0
    %770 = vmatpush1.msra.mxu0 0.0
    %771 = vmatprep.subr.mxu0 0.0
    %772 = vmatpush1.msra.mxu0 0.0
    %773 = vmatprep.subr.mxu0 0.0
    %774 = vmatpush1.msra.mxu0 0.0
    %775 = vmatprep.subr.mxu0 0.0
    %776 = vmatpush1.msra.mxu0 0.0
    %777 = vmatprep.subr.mxu0 0.0
    %778 = vmatpush1.msra.mxu0 0.0
    %779 = vmatprep.subr.mxu0 0.0
    %780 = vmatpush1.msra.mxu0 0.0
    %781 = vmatprep.subr.mxu0 0.0
    %782 = vmatpush1.msra.mxu0 0.0
    %783 = vmatprep.subr.mxu0 0.0
    %784 = vmatpush1.msra.mxu0 0.0
    %785 = vmatprep.subr.mxu0 0.0
    %786 = vmatpush1.msra.mxu0 0.0
    %787 = vmatprep.subr.mxu0 0.0
    %788 = vmatpush1.msra.mxu0 0.0
    %789 = vmatprep.subr.mxu0 0.0
    %790 = vmatpush1.msra.mxu0 0.0
    %791 = vmatprep.subr.mxu0 0.0
    %792 = vmatpush1.msra.mxu0 0.0
    %793 = vmatprep.subr.mxu0 0.0
    %794 = vmatpush1.msra.mxu0 %v757
    %795 = vmatprep.subr.mxu0 0.0
    %796 = vmatpush1.msra.mxu0 %v756
    %797 = vmatprep.subr.mxu0 0.0
    %798 = vmatpush1.msra.mxu0 %v755
    %799 = vmatprep.subr.mxu0 0.0
    %800 = vmatpush1.msra.mxu0 %v754
    %801 = vmatprep.subr.mxu0 0.0
    %802 = vmatpush2.msra.mxu0 0.0
    %803 = vmatprep.subr.mxu0 0.0
    %804 = vmatpush2.msra.mxu0 0.0
    %805 = vmatprep.subr.mxu0 0.0
    %806 = vmatpush2.msra.mxu0 0.0
    %807 = vmatprep.subr.mxu0 0.0
    %808 = vmatpush2.msra.mxu0 0.0
    %809 = vmatprep.subr.mxu0 0.0
    %810 = vmatpush2.msra.mxu0 0.0
    %811 = vmatprep.subr.mxu0 0.0
    %812 = vmatpush2.msra.mxu0 0.0
    %813 = vmatprep.subr.mxu0 0.0
    %814 = vmatpush2.msra.mxu0 0.0
    %815 = vmatprep.subr.mxu0 0.0
    %816 = vmatpush2.msra.mxu0 0.0
    %817 = vmatprep.subr.mxu0 0.0
    %818 = vmatpush2.msra.mxu0 0.0
    %819 = vmatprep.subr.mxu0 0.0
    %820 = vmatpush2.msra.mxu0 0.0
    %821 = vmatprep.subr.mxu0 0.0
    %822 = vmatpush2.msra.mxu0 0.0
    %823 = vmatprep.subr.mxu0 0.0
    %824 = vmatpush2.msra.mxu0 0.0
    %825 = vmatprep.subr.mxu0 0.0
    %826 = vmatpush2.msra.mxu0 0.0
    %827 = vmatprep.subr.mxu0 0.0
    %828 = vmatpush2.msra.mxu0 0.0
    %829 = vmatprep.subr.mxu0 0.0
    %830 = vmatpush2.msra.mxu0 0.0
    %831 = vmatprep.subr.mxu0 0.0
    %832 = vmatpush2.msra.mxu0 0.0
    %833 = vmatprep.mubr.f32.mxu0 0.0
    %834 = vmatmul.mubr.f32.gmra.mxu0 %v767
    %v835 = vpop.f32.mrf.mxu0
    %v836 = vadd.f32 %v764, %v835
    %v837 = vpop.f32.mrf.mxu0
    %838 = vdwg.mxu0
    %s839 = scalar_lea.vmem [#allocation7], 16
    %840 = vst.msk [vmem:[%s839] sm:$0xff] %vm311, %v836
    %s841 = scalar_lea.vmem %s0, 24
    %v842 = vld [vmem:[%s841] sm:$0xff]
    %s843 = scalar_lea.vmem %s1, 96
    %v844 = vld [vmem:[%s843] sm:$0xff]
    %v845 = vld [vmem:[%s843 + $0x8] sm:$0xff]
    %v846 = vld [vmem:[%s843 + $0x10] sm:$0xff]
    %v847 = vld [vmem:[%s843 + $0x18] sm:$0xff]
    %s848 = scalar_lea.vmem [#allocation2], 3
    %v849 = vld [vmem:[%s848] sm:$0x1]
    %v851 = vlaneseq
    %v852 = vshrl.u32 %v851, 7
    %v853 = vsub.s32 0, %v852
    %v854 = vrot.slane %v849, %v853
    %v857 = vsel %vm67, %v842, 0
    %859 = vmatprep.subr.mxu0 0.0
    %860 = vmatpush1.msra.mxu0 0.0
    %861 = vmatprep.subr.mxu0 0.0
    %862 = vmatpush1.msra.mxu0 0.0
    %863 = vmatprep.subr.mxu0 0.0
    %864 = vmatpush1.msra.mxu0 0.0
    %865 = vmatprep.subr.mxu0 0.0
    %866 = vmatpush1.msra.mxu0 0.0
    %867 = vmatprep.subr.mxu0 0.0
    %868 = vmatpush1.msra.mxu0 0.0
    %869 = vmatprep.subr.mxu0 0.0
    %870 = vmatpush1.msra.mxu0 0.0
    %871 = vmatprep.subr.mxu0 0.0
    %872 = vmatpush1.msra.mxu0 0.0
    %873 = vmatprep.subr.mxu0 0.0
    %874 = vmatpush1.msra.mxu0 0.0
    %875 = vmatprep.subr.mxu0 0.0
    %876 = vmatpush1.msra.mxu0 0.0
    %877 = vmatprep.subr.mxu0 0.0
    %878 = vmatpush1.msra.mxu0 0.0
    %879 = vmatprep.subr.mxu0 0.0
    %880 = vmatpush1.msra.mxu0 0.0
    %881 = vmatprep.subr.mxu0 0.0
    %882 = vmatpush1.msra.mxu0 0.0
    %883 = vmatprep.subr.mxu0 0.0
    %884 = vmatpush1.msra.mxu0 %v847
    %885 = vmatprep.subr.mxu0 0.0
    %886 = vmatpush1.msra.mxu0 %v846
    %887 = vmatprep.subr.mxu0 0.0
    %888 = vmatpush1.msra.mxu0 %v845
    %889 = vmatprep.subr.mxu0 0.0
    %890 = vmatpush1.msra.mxu0 %v844
    %891 = vmatprep.subr.mxu0 0.0
    %892 = vmatpush2.msra.mxu0 0.0
    %893 = vmatprep.subr.mxu0 0.0
    %894 = vmatpush2.msra.mxu0 0.0
    %895 = vmatprep.subr.mxu0 0.0
    %896 = vmatpush2.msra.mxu0 0.0
    %897 = vmatprep.subr.mxu0 0.0
    %898 = vmatpush2.msra.mxu0 0.0
    %899 = vmatprep.subr.mxu0 0.0
    %900 = vmatpush2.msra.mxu0 0.0
    %901 = vmatprep.subr.mxu0 0.0
    %902 = vmatpush2.msra.mxu0 0.0
    %903 = vmatprep.subr.mxu0 0.0
    %904 = vmatpush2.msra.mxu0 0.0
    %905 = vmatprep.subr.mxu0 0.0
    %906 = vmatpush2.msra.mxu0 0.0
    %907 = vmatprep.subr.mxu0 0.0
    %908 = vmatpush2.msra.mxu0 0.0
    %909 = vmatprep.subr.mxu0 0.0
    %910 = vmatpush2.msra.mxu0 0.0
    %911 = vmatprep.subr.mxu0 0.0
    %912 = vmatpush2.msra.mxu0 0.0
    %913 = vmatprep.subr.mxu0 0.0
    %914 = vmatpush2.msra.mxu0 0.0
    %915 = vmatprep.subr.mxu0 0.0
    %916 = vmatpush2.msra.mxu0 0.0
    %917 = vmatprep.subr.mxu0 0.0
    %918 = vmatpush2.msra.mxu0 0.0
    %919 = vmatprep.subr.mxu0 0.0
    %920 = vmatpush2.msra.mxu0 0.0
    %921 = vmatprep.subr.mxu0 0.0
    %922 = vmatpush2.msra.mxu0 0.0
    %923 = vmatprep.mubr.f32.mxu0 0.0
    %924 = vmatmul.mubr.f32.gmra.mxu0 %v857
    %v925 = vpop.f32.mrf.mxu0
    %v926 = vadd.f32 %v854, %v925
    %v927 = vpop.f32.mrf.mxu0
    %928 = vdwg.mxu0
    %v929 = vmax.f32 %v926, 0.0
    %s930 = scalar_lea.vmem [#allocation5], 96
    %v931 = vld [vmem:[%s930] sm:$0xff]
    %v932 = vld [vmem:[%s930 + $0x8] sm:$0xff]
    %v933 = vld [vmem:[%s930 + $0x10] sm:$0xff]
    %v934 = vld [vmem:[%s930 + $0x18] sm:$0xff]
    %s935 = scalar_lea.vmem %s4, 3
    %v936 = vld [vmem:[%s935] sm:$0x1]
    %v938 = vlaneseq
    %v939 = vshrl.u32 %v938, 7
    %v940 = vsub.s32 0, %v939
    %v941 = vrot.slane %v936, %v940
    %v944 = vsel %vm67, %v929, 0
    %946 = vmatprep.subr.mxu0 0.0
    %947 = vmatpush1.msra.mxu0 0.0
    %948 = vmatprep.subr.mxu0 0.0
    %949 = vmatpush1.msra.mxu0 0.0
    %950 = vmatprep.subr.mxu0 0.0
    %951 = vmatpush1.msra.mxu0 0.0
    %952 = vmatprep.subr.mxu0 0.0
    %953 = vmatpush1.msra.mxu0 0.0
    %954 = vmatprep.subr.mxu0 0.0
    %955 = vmatpush1.msra.mxu0 0.0
    %956 = vmatprep.subr.mxu0 0.0
    %957 = vmatpush1.msra.mxu0 0.0
    %958 = vmatprep.subr.mxu0 0.0
    %959 = vmatpush1.msra.mxu0 0.0
    %960 = vmatprep.subr.mxu0 0.0
    %961 = vmatpush1.msra.mxu0 0.0
    %962 = vmatprep.subr.mxu0 0.0
    %963 = vmatpush1.msra.mxu0 0.0
    %964 = vmatprep.subr.mxu0 0.0
    %965 = vmatpush1.msra.mxu0 0.0
    %966 = vmatprep.subr.mxu0 0.0
    %967 = vmatpush1.msra.mxu0 0.0
    %968 = vmatprep.subr.mxu0 0.0
    %969 = vmatpush1.msra.mxu0 0.0
    %970 = vmatprep.subr.mxu0 0.0
    %971 = vmatpush1.msra.mxu0 %v934
    %972 = vmatprep.subr.mxu0 0.0
    %973 = vmatpush1.msra.mxu0 %v933
    %974 = vmatprep.subr.mxu0 0.0
    %975 = vmatpush1.msra.mxu0 %v932
    %976 = vmatprep.subr.mxu0 0.0
    %977 = vmatpush1.msra.mxu0 %v931
    %978 = vmatprep.subr.mxu0 0.0
    %979 = vmatpush2.msra.mxu0 0.0
    %980 = vmatprep.subr.mxu0 0.0
    %981 = vmatpush2.msra.mxu0 0.0
    %982 = vmatprep.subr.mxu0 0.0
    %983 = vmatpush2.msra.mxu0 0.0
    %984 = vmatprep.subr.mxu0 0.0
    %985 = vmatpush2.msra.mxu0 0.0
    %986 = vmatprep.subr.mxu0 0.0
    %987 = vmatpush2.msra.mxu0 0.0
    %988 = vmatprep.subr.mxu0 0.0
    %989 = vmatpush2.msra.mxu0 0.0
    %990 = vmatprep.subr.mxu0 0.0
    %991 = vmatpush2.msra.mxu0 0.0
    %992 = vmatprep.subr.mxu0 0.0
    %993 = vmatpush2.msra.mxu0 0.0
    %994 = vmatprep.subr.mxu0 0.0
    %995 = vmatpush2.msra.mxu0 0.0
    %996 = vmatprep.subr.mxu0 0.0
    %997 = vmatpush2.msra.mxu0 0.0
    %998 = vmatprep.subr.mxu0 0.0
    %999 = vmatpush2.msra.mxu0 0.0
    %1000 = vmatprep.subr.mxu0 0.0
    %1001 = vmatpush2.msra.mxu0 0.0
    %1002 = vmatprep.subr.mxu0 0.0
    %1003 = vmatpush2.msra.mxu0 0.0
    %1004 = vmatprep.subr.mxu0 0.0
    %1005 = vmatpush2.msra.mxu0 0.0
    %1006 = vmatprep.subr.mxu0 0.0
    %1007 = vmatpush2.msra.mxu0 0.0
    %1008 = vmatprep.subr.mxu0 0.0
    %1009 = vmatpush2.msra.mxu0 0.0
    %1010 = vmatprep.mubr.f32.mxu0 0.0
    %1011 = vmatmul.mubr.f32.gmra.mxu0 %v944
    %v1012 = vpop.f32.mrf.mxu0
    %v1013 = vadd.f32 %v941, %v1012
    %v1014 = vpop.f32.mrf.mxu0
    %1015 = vdwg.mxu0
    %v1016 = vmax.f32 %v1013, 0.0
    %s1017 = scalar_lea.vmem %s5, 96
    %v1018 = vld [vmem:[%s1017] sm:$0xff]
    %v1019 = vld [vmem:[%s1017 + $0x8] sm:$0xff]
    %v1020 = vld [vmem:[%s1017 + $0x10] sm:$0xff]
    %v1021 = vld [vmem:[%s1017 + $0x18] sm:$0xff]
    %s1022 = scalar_lea.vmem %s6, 3
    %v1023 = vld [vmem:[%s1022] sm:$0x1]
    %v1025 = vlaneseq
    %v1026 = vshrl.u32 %v1025, 7
    %v1027 = vsub.s32 0, %v1026
    %v1028 = vrot.slane %v1023, %v1027
    %v1031 = vsel %vm67, %v1016, 0
    %1033 = vmatprep.subr.mxu0 0.0
    %1034 = vmatpush1.msra.mxu0 0.0
    %1035 = vmatprep.subr.mxu0 0.0
    %1036 = vmatpush1.msra.mxu0 0.0
    %1037 = vmatprep.subr.mxu0 0.0
    %1038 = vmatpush1.msra.mxu0 0.0
    %1039 = vmatprep.subr.mxu0 0.0
    %1040 = vmatpush1.msra.mxu0 0.0
    %1041 = vmatprep.subr.mxu0 0.0
    %1042 = vmatpush1.msra.mxu0 0.0
    %1043 = vmatprep.subr.mxu0 0.0
    %1044 = vmatpush1.msra.mxu0 0.0
    %1045 = vmatprep.subr.mxu0 0.0
    %1046 = vmatpush1.msra.mxu0 0.0
    %1047 = vmatprep.subr.mxu0 0.0
    %1048 = vmatpush1.msra.mxu0 0.0
    %1049 = vmatprep.subr.mxu0 0.0
    %1050 = vmatpush1.msra.mxu0 0.0
    %1051 = vmatprep.subr.mxu0 0.0
    %1052 = vmatpush1.msra.mxu0 0.0
    %1053 = vmatprep.subr.mxu0 0.0
    %1054 = vmatpush1.msra.mxu0 0.0
    %1055 = vmatprep.subr.mxu0 0.0
    %1056 = vmatpush1.msra.mxu0 0.0
    %1057 = vmatprep.subr.mxu0 0.0
    %1058 = vmatpush1.msra.mxu0 %v1021
    %1059 = vmatprep.subr.mxu0 0.0
    %1060 = vmatpush1.msra.mxu0 %v1020
    %1061 = vmatprep.subr.mxu0 0.0
    %1062 = vmatpush1.msra.mxu0 %v1019
    %1063 = vmatprep.subr.mxu0 0.0
    %1064 = vmatpush1.msra.mxu0 %v1018
    %1065 = vmatprep.subr.mxu0 0.0
    %1066 = vmatpush2.msra.mxu0 0.0
    %1067 = vmatprep.subr.mxu0 0.0
    %1068 = vmatpush2.msra.mxu0 0.0
    %1069 = vmatprep.subr.mxu0 0.0
    %1070 = vmatpush2.msra.mxu0 0.0
    %1071 = vmatprep.subr.mxu0 0.0
    %1072 = vmatpush2.msra.mxu0 0.0
    %1073 = vmatprep.subr.mxu0 0.0
    %1074 = vmatpush2.msra.mxu0 0.0
    %1075 = vmatprep.subr.mxu0 0.0
    %1076 = vmatpush2.msra.mxu0 0.0
    %1077 = vmatprep.subr.mxu0 0.0
    %1078 = vmatpush2.msra.mxu0 0.0
    %1079 = vmatprep.subr.mxu0 0.0
    %1080 = vmatpush2.msra.mxu0 0.0
    %1081 = vmatprep.subr.mxu0 0.0
    %1082 = vmatpush2.msra.mxu0 0.0
    %1083 = vmatprep.subr.mxu0 0.0
    %1084 = vmatpush2.msra.mxu0 0.0
    %1085 = vmatprep.subr.mxu0 0.0
    %1086 = vmatpush2.msra.mxu0 0.0
    %1087 = vmatprep.subr.mxu0 0.0
    %1088 = vmatpush2.msra.mxu0 0.0
    %1089 = vmatprep.subr.mxu0 0.0
    %1090 = vmatpush2.msra.mxu0 0.0
    %1091 = vmatprep.subr.mxu0 0.0
    %1092 = vmatpush2.msra.mxu0 0.0
    %1093 = vmatprep.subr.mxu0 0.0
    %1094 = vmatpush2.msra.mxu0 0.0
    %1095 = vmatprep.subr.mxu0 0.0
    %1096 = vmatpush2.msra.mxu0 0.0
    %1097 = vmatprep.mubr.f32.mxu0 0.0
    %1098 = vmatmul.mubr.f32.gmra.mxu0 %v1031
    %v1099 = vpop.f32.mrf.mxu0
    %v1100 = vadd.f32 %v1028, %v1099
    %v1101 = vpop.f32.mrf.mxu0
    %1102 = vdwg.mxu0
    %s1103 = scalar_lea.vmem [#allocation7], 24
    %1104 = vst.msk [vmem:[%s1103] sm:$0xff] %vm311, %v1100
    // Predicated region
    $region38: #{tpu_custom_call.1} parent=1 // pred_check
      _
    $region39: #{tpu_custom_call.1} parent=1 // pred_check_branch
      %1106 = sbr.rel (0) target = $region41
    $region40: #{tpu_custom_call.1} parent=1 // pred_region
      %s1108 = ssub.s32 512, 512
      %1109 = vsyncadd [#allocation4], %s1108
      %s1110 = sshll.u32 [#allocation7], 4
      %s1111 = int_to_ptr.vmem [resolvable:$true] %s1110
      %1116 = dma.vmem_to_hbm [thread:$0]  %s1111, 512, %s7, [#allocation4], 128, 128, 8
    $region41: #{tpu_custom_call.1} parent=1 // pred_fallthru
      _
    // Predicated region
    $region42: #{tpu_custom_call.1} parent=1 // pred_check
      _
    $region43: #{tpu_custom_call.1} parent=1 // pred_check_branch
      %1118 = sbr.rel (0) target = $region45
    $region44: #{tpu_custom_call.1} parent=1 // pred_region
      %1119 = dma.done [#allocation4], 512
    $region45: #{tpu_custom_call.1} parent=1 // pred_fallthru
      _
    %1120 = vsyncpa [#allocation3], 1
    %1121 = vsyncpa [#allocation6], 1
    %1122 = vsyncpa [#allocation4], 1

</llo_original>
